<compile_context>
chip_gen: v7x
topology: tpu7x:2x2x1
jax: 0.10.0
libtpu: 0.0.40
codegen_flags: <defaults>
</compile_context>

<pallas_src>
import functools

import jax
import jax.numpy as jnp
import numpy as np
from jax.experimental import pallas as pl
from jax.experimental.pallas import tpu as pltpu

WEIGHT_FACTOR = 100.0

# 2 inputs x 2 pipeline buffers of (block_rows, T) must fit in this budget.
_PIPELINE_VMEM_BUDGET = 16 * 1024 * 1024
# Explicit scoped-VMEM limit: above the 16/32 MiB defaults, below v7x's 64 MiB.
_VMEM_LIMIT_BYTES = 48 * 1024 * 1024


def _round_up(x, m):
    return ((x + m - 1) // m) * m


def _rms_loss_kernel(est_ref, tgt_ref, out_w_ref, out_d_ref,
                     acc_w_ref, acc_d_ref, *,
                     n_rows, block_rows, blocks_per_split,
                     num_full_blocks, mask_needed):
    """Grid: (row-split, row-block). Accumulators live in per-core VMEM."""
    c = pl.program_id(0)          # "parallel" split (one per TensorCore on v7x)
    i = pl.program_id(1)          # "arbitrary" reduction over row-blocks

    @pl.when(i == 0)
    def _():
        acc_w_ref[...] = jnp.zeros_like(acc_w_ref)
        acc_d_ref[...] = jnp.zeros_like(acc_d_ref)

    est = est_ref[...].astype(jnp.float32)          # (block_rows, T)
    tgt = tgt_ref[...].astype(jnp.float32)

    rms_e = jnp.sqrt(jnp.mean(est * est, axis=-1, keepdims=True))   # (bl, 1)
    rms_t = jnp.sqrt(jnp.mean(tgt * tgt, axis=-1, keepdims=True))
    diff = rms_t - rms_e
    weight = jnp.maximum(jnp.abs(diff), 1.0 / WEIGHT_FACTOR) * WEIGHT_FACTOR
    w15 = weight * jnp.sqrt(weight)                 # weight ** 1.5
    d2 = diff * diff

    if mask_needed:
        global_block = c * blocks_per_split + i

        # Fully-valid blocks: unmasked accumulate (the common case).
        @pl.when(global_block < num_full_blocks)
        def _():
            acc_w_ref[...] += jnp.sum(w15, keepdims=True)
            acc_d_ref[...] += jnp.sum(d2, keepdims=True)

        # Edge / duplicated blocks: rows beyond n_rows hold garbage (no pad),
        # so select with jnp.where (not multiply) to kill potential NaN/Inf.
        @pl.when(global_block >= num_full_blocks)
        def _():
            row_ids = (jax.lax.broadcasted_iota(jnp.int32, (block_rows, 1), 0)
                       + global_block * block_rows)
            valid = row_ids < n_rows
            acc_w_ref[...] += jnp.sum(jnp.where(valid, w15, 0.0), keepdims=True)
            acc_d_ref[...] += jnp.sum(jnp.where(valid, d2, 0.0), keepdims=True)
    else:
        acc_w_ref[...] += jnp.sum(w15, keepdims=True)
        acc_d_ref[...] += jnp.sum(d2, keepdims=True)

    @pl.when(i == pl.num_programs(1) - 1)
    def _():
        out_w_ref[0] = acc_w_ref[...]
        out_d_ref[0] = acc_d_ref[...]


def rms_loss(est_targets, targets, block_rows=None, num_row_splits=2):
    assert est_targets.shape == targets.shape
    assert est_targets.ndim == 3
    B, S, T = est_targets.shape
    n_rows = B * S

    est2 = est_targets.reshape(n_rows, T)   # no dtype cast: stream native width
    tgt2 = targets.reshape(n_rows, T)

    itemsize = jnp.dtype(est_targets.dtype).itemsize
    if block_rows is None:
        # 2 inputs x 2 pipeline buffers per row of T elements.
        bytes_per_row = 4 * T * itemsize
        block_rows = (_PIPELINE_VMEM_BUDGET // bytes_per_row) // 8 * 8
    block_rows = int(max(8, min(block_rows, _round_up(n_rows, 8))))

    num_blocks = pl.cdiv(n_rows, block_rows)
    num_splits = int(max(1, min(num_row_splits, num_blocks)))
    blocks_per_split = pl.cdiv(num_blocks, num_splits)
    num_full_blocks = n_rows // block_rows          # blocks with every row valid
    mask_needed = num_splits * blocks_per_split * block_rows > n_rows

    def row_block_map(c, i):
        # Clamp so duplicated tail blocks (when splits don't divide evenly)
        # never point past the array; their rows are masked to zero in-kernel.
        return (jnp.minimum(c * blocks_per_split + i, num_blocks - 1), 0)

    kernel = functools.partial(
        _rms_loss_kernel,
        n_rows=n_rows, block_rows=block_rows, blocks_per_split=blocks_per_split,
        num_full_blocks=num_full_blocks, mask_needed=mask_needed)

    out_w, out_d = pl.pallas_call(
        kernel,
        out_shape=(jax.ShapeDtypeStruct((num_splits, 1, 1), jnp.float32),
                   jax.ShapeDtypeStruct((num_splits, 1, 1), jnp.float32)),
        grid_spec=pltpu.PrefetchScalarGridSpec(
            num_scalar_prefetch=0,
            grid=(num_splits, blocks_per_split),
            in_specs=[
                pl.BlockSpec((block_rows, T), row_block_map),
                pl.BlockSpec((block_rows, T), row_block_map),
            ],
            out_specs=[
                pl.BlockSpec((1, 1, 1), lambda c, i: (c, 0, 0)),
                pl.BlockSpec((1, 1, 1), lambda c, i: (c, 0, 0)),
            ],
            scratch_shapes=[
                pltpu.VMEM((1, 1), jnp.float32),   # per-split sum of weight**1.5
                pltpu.VMEM((1, 1), jnp.float32),   # per-split sum of diff**2
            ],
        ),
        compiler_params=pltpu.CompilerParams(
            dimension_semantics=("parallel", "arbitrary"),
            vmem_limit_bytes=_VMEM_LIMIT_BYTES),
    )(est2, tgt2)

    n = jnp.float32(n_rows)
    # loss = mean(weight**1.5) * mean((rms_e - rms_t)**2)
    return (jnp.sum(out_w) / n) * (jnp.sum(out_d) / n)


def rms_loss_ref(est_targets, targets):
    """Pure-JAX reference mirroring the PyTorch module."""
    B, S, T = est_targets.shape
    e = est_targets.reshape(B * S, T).astype(jnp.float32)
    t = targets.reshape(B * S, T).astype(jnp.float32)
    rms_e = jnp.sqrt(jnp.mean(e * e, axis=-1))
    rms_t = jnp.sqrt(jnp.mean(t * t, axis=-1))
    weight = jnp.maximum(jnp.abs(rms_t - rms_e), 1.0 / WEIGHT_FACTOR) * WEIGHT_FACTOR
    mse = jnp.mean((rms_e - rms_t) ** 2)            # nn.MSELoss -> mean reduction
    return jnp.mean(weight ** 1.5 * mse)


if __name__ == "__main__":
    key = jax.random.PRNGKey(0)

    # 1) Default path: (batch=2, sources=4, time=16), float32.
    k1, k2 = jax.random.split(key)
    est = jax.random.normal(k1, (2, 4, 16), dtype=jnp.float32)
    tgt = jax.random.normal(k2, (2, 4, 16), dtype=jnp.float32)
    out = jax.block_until_ready(rms_loss(est, tgt))
    ref = jax.block_until_ready(rms_loss_ref(est, tgt))
    np.testing.assert_allclose(np.asarray(out), np.asarray(ref), rtol=1e-5, atol=1e-6)

    # 2) Ragged row count + forced small blocks + 2-way split: exercises the
    #    masked edge block and the clamped duplicate-block paths.
    k3, k4 = jax.random.split(k1)
    est_r = jax.random.normal(k3, (3, 7, 16), dtype=jnp.float32)
    tgt_r = jax.random.normal(k4, (3, 7, 16), dtype=jnp.float32)
    out_r = jax.block_until_ready(rms_loss(est_r, tgt_r, block_rows=8, num_row_splits=2))
    ref_r = jax.block_until_ready(rms_loss_ref(est_r, tgt_r))
    np.testing.assert_allclose(np.asarray(out_r), np.asarray(ref_r), rtol=1e-5, atol=1e-6)

    # 3) bf16 inputs stream at native width (no wrapper-side f32 copy in HBM).
    est_b = est.astype(jnp.bfloat16)
    tgt_b = tgt.astype(jnp.bfloat16)
    out_b = jax.block_until_ready(rms_loss(est_b, tgt_b))
    ref_b = jax.block_until_ready(rms_loss_ref(est_b, tgt_b))
    np.testing.assert_allclose(np.asarray(out_b), np.asarray(ref_b), rtol=1e-4, atol=1e-5)

    print("KERNEL_OK")
</pallas_src>

<mosaic_0001>
module attributes {stable_mosaic.version = 11 : i64} {
  func.func @_rms_loss_kernel(%arg0: i32, %arg1: i32, %arg2: memref<8x16xf32, #tpu.memory_space<vmem>>, %arg3: memref<8x16xf32, #tpu.memory_space<vmem>>, %arg4: memref<1x1x1xf32, #tpu.memory_space<vmem>>, %arg5: memref<1x1x1xf32, #tpu.memory_space<vmem>>, %arg6: memref<1x1xf32, #tpu.memory_space<vmem>>, %arg7: memref<1x1xf32, #tpu.memory_space<vmem>>) attributes {dimension_semantics = [#tpu.dimension_semantics<parallel>, #tpu.dimension_semantics<arbitrary>], iteration_bounds = array<i64: 1, 1>, scalar_prefetch = 0 : i64, scratch_operands = 2 : i64, tpu.core_type = #tpu.core_type<tc>, window_params = [{transform_indices = @transform_0, window_bounds = array<i64: 8, 16>}, {transform_indices = @transform_1, window_bounds = array<i64: 8, 16>}, {transform_indices = @transform_2, window_bounds = array<i64: 1, 1, 1>}, {transform_indices = @transform_3, window_bounds = array<i64: 1, 1, 1>}]} {
    %c0_i32 = arith.constant 0 : i32
    %0 = arith.cmpi eq, %arg1, %c0_i32 : i32
    %1 = arith.extui %0 : i1 to i32
    %c0_i32_0 = arith.constant 0 : i32
    %2 = arith.cmpi ne, %1, %c0_i32_0 : i32
    scf.if %2 {
      %cst_21 = arith.constant 0.000000e+00 : f32
      %45 = vector.broadcast %cst_21 : f32 to vector<1x1xf32>
      %c0_22 = arith.constant 0 : index
      %c0_23 = arith.constant 0 : index
      %46 = vector.load %arg6[%c0_22, %c0_23] : memref<1x1xf32, #tpu.memory_space<vmem>>, vector<1x1xf32>
      tpu.vector_store %arg6[%c0_22, %c0_23], %45 {strides = array<i32>} : memref<1x1xf32, #tpu.memory_space<vmem>>, vector<1x1xf32>,
      %cst_24 = arith.constant 0.000000e+00 : f32
      %47 = vector.broadcast %cst_24 : f32 to vector<1x1xf32>
      %c0_25 = arith.constant 0 : index
      %c0_26 = arith.constant 0 : index
      %48 = vector.load %arg7[%c0_25, %c0_26] : memref<1x1xf32, #tpu.memory_space<vmem>>, vector<1x1xf32>
      tpu.vector_store %arg7[%c0_25, %c0_26], %47 {strides = array<i32>} : memref<1x1xf32, #tpu.memory_space<vmem>>, vector<1x1xf32>,
    } else {
    }
    %c0 = arith.constant 0 : index
    %c0_1 = arith.constant 0 : index
    %3 = vector.load %arg2[%c0, %c0_1] : memref<8x16xf32, #tpu.memory_space<vmem>>, vector<8x16xf32>
    %c0_2 = arith.constant 0 : index
    %c0_3 = arith.constant 0 : index
    %4 = vector.load %arg3[%c0_2, %c0_3] : memref<8x16xf32, #tpu.memory_space<vmem>>, vector<8x16xf32>
    %5 = arith.mulf %3, %3 : vector<8x16xf32>
    %cst = arith.constant dense<0.000000e+00> : vector<8xf32>
    %6 = vector.multi_reduction <add>, %5, %cst [1] : vector<8x16xf32> to vector<8xf32>
    %7 = vector.shape_cast %6 : vector<8xf32> to vector<8x1xf32>
    %cst_4 = arith.constant 1.600000e+01 : f32
    %8 = vector.broadcast %cst_4 : f32 to vector<8x1xf32>
    %9 = arith.divf %7, %8 : vector<8x1xf32>
    %10 = math.sqrt %9 : vector<8x1xf32>
    %11 = arith.mulf %4, %4 : vector<8x16xf32>
    %cst_5 = arith.constant dense<0.000000e+00> : vector<8xf32>
    %12 = vector.multi_reduction <add>, %11, %cst_5 [1] : vector<8x16xf32> to vector<8xf32>
    %13 = vector.shape_cast %12 : vector<8xf32> to vector<8x1xf32>
    %cst_6 = arith.constant 1.600000e+01 : f32
    %14 = vector.broadcast %cst_6 : f32 to vector<8x1xf32>
    %15 = arith.divf %13, %14 : vector<8x1xf32>
    %16 = math.sqrt %15 : vector<8x1xf32>
    %17 = arith.subf %16, %10 : vector<8x1xf32>
    %18 = math.absf %17 : vector<8x1xf32>
    %cst_7 = arith.constant 0.00999999977 : f32
    %19 = vector.broadcast %cst_7 : f32 to vector<8x1xf32>
    %20 = arith.maximumf %18, %19 : vector<8x1xf32>
    %cst_8 = arith.constant 1.000000e+02 : f32
    %21 = vector.broadcast %cst_8 : f32 to vector<8x1xf32>
    %22 = arith.mulf %20, %21 : vector<8x1xf32>
    %23 = math.sqrt %22 : vector<8x1xf32>
    %24 = arith.mulf %22, %23 : vector<8x1xf32>
    %25 = arith.mulf %17, %17 : vector<8x1xf32>
    %c0_9 = arith.constant 0 : index
    %c0_10 = arith.constant 0 : index
    %26 = vector.load %arg6[%c0_9, %c0_10] : memref<1x1xf32, #tpu.memory_space<vmem>>, vector<1x1xf32>
    %27 = vector.shape_cast %24 : vector<8x1xf32> to vector<1x8x1xf32>
    %cst_11 = arith.constant dense<0.000000e+00> : vector<1xf32>
    %28 = vector.multi_reduction <add>, %27, %cst_11 [1, 2] : vector<1x8x1xf32> to vector<1xf32>
    %29 = vector.shape_cast %28 : vector<1xf32> to vector<1x1x1xf32>
    %30 = vector.extract %29[0, 0, 0] : f32 from vector<1x1x1xf32>
    %31 = vector.broadcast %30 : f32 to vector<1x1xf32>
    %32 = arith.addf %26, %31 : vector<1x1xf32>
    %c0_12 = arith.constant 0 : index
    %c0_13 = arith.constant 0 : index
    %33 = vector.load %arg6[%c0_12, %c0_13] : memref<1x1xf32, #tpu.memory_space<vmem>>, vector<1x1xf32>
    tpu.vector_store %arg6[%c0_12, %c0_13], %32 {strides = array<i32>} : memref<1x1xf32, #tpu.memory_space<vmem>>, vector<1x1xf32>,
    %c0_14 = arith.constant 0 : index
    %c0_15 = arith.constant 0 : index
    %34 = vector.load %arg7[%c0_14, %c0_15] : memref<1x1xf32, #tpu.memory_space<vmem>>, vector<1x1xf32>
    %35 = vector.shape_cast %25 : vector<8x1xf32> to vector<1x8x1xf32>
    %cst_16 = arith.constant dense<0.000000e+00> : vector<1xf32>
    %36 = vector.multi_reduction <add>, %35, %cst_16 [1, 2] : vector<1x8x1xf32> to vector<1xf32>
    %37 = vector.shape_cast %36 : vector<1xf32> to vector<1x1x1xf32>
    %38 = vector.extract %37[0, 0, 0] : f32 from vector<1x1x1xf32>
    %39 = vector.broadcast %38 : f32 to vector<1x1xf32>
    %40 = arith.addf %34, %39 : vector<1x1xf32>
    %c0_17 = arith.constant 0 : index
    %c0_18 = arith.constant 0 : index
    %41 = vector.load %arg7[%c0_17, %c0_18] : memref<1x1xf32, #tpu.memory_space<vmem>>, vector<1x1xf32>
    tpu.vector_store %arg7[%c0_17, %c0_18], %40 {strides = array<i32>} : memref<1x1xf32, #tpu.memory_space<vmem>>, vector<1x1xf32>,
    %c0_i32_19 = arith.constant 0 : i32
    %42 = arith.cmpi eq, %arg1, %c0_i32_19 : i32
    %43 = arith.extui %42 : i1 to i32
    %c0_i32_20 = arith.constant 0 : i32
    %44 = arith.cmpi ne, %43, %c0_i32_20 : i32
    scf.if %44 {
      %c0_21 = arith.constant 0 : index
      %c0_22 = arith.constant 0 : index
      %45 = vector.load %arg6[%c0_21, %c0_22] : memref<1x1xf32, #tpu.memory_space<vmem>>, vector<1x1xf32>
      %c0_23 = arith.constant 0 : index
      %c0_24 = arith.constant 0 : index
      %c0_25 = arith.constant 0 : index
      %46 = vector.load %arg4[%c0_23, %c0_24, %c0_25] : memref<1x1x1xf32, #tpu.memory_space<vmem>>, vector<1x1x1xf32>
      %47 = vector.shape_cast %46 : vector<1x1x1xf32> to vector<1x1xf32>
      %48 = vector.shape_cast %45 : vector<1x1xf32> to vector<1x1x1xf32>
      tpu.vector_store %arg4[%c0_23, %c0_24, %c0_25], %48 {strides = array<i32>} : memref<1x1x1xf32, #tpu.memory_space<vmem>>, vector<1x1x1xf32>,
      %c0_26 = arith.constant 0 : index
      %c0_27 = arith.constant 0 : index
      %49 = vector.load %arg7[%c0_26, %c0_27] : memref<1x1xf32, #tpu.memory_space<vmem>>, vector<1x1xf32>
      %c0_28 = arith.constant 0 : index
      %c0_29 = arith.constant 0 : index
      %c0_30 = arith.constant 0 : index
      %50 = vector.load %arg5[%c0_28, %c0_29, %c0_30] : memref<1x1x1xf32, #tpu.memory_space<vmem>>, vector<1x1x1xf32>
      %51 = vector.shape_cast %50 : vector<1x1x1xf32> to vector<1x1xf32>
      %52 = vector.shape_cast %49 : vector<1x1xf32> to vector<1x1x1xf32>
      tpu.vector_store %arg5[%c0_28, %c0_29, %c0_30], %52 {strides = array<i32>} : memref<1x1x1xf32, #tpu.memory_space<vmem>>, vector<1x1x1xf32>,
    } else {
    }
    return
  }
  func.func @transform_0(%arg0: i32, %arg1: i32) -> (i32, i32) {
    %c1_i32 = arith.constant 1 : i32
    %0 = arith.muli %arg0, %c1_i32 : i32
    %1 = arith.addi %0, %arg1 : i32
    %c0_i32 = arith.constant 0 : i32
    %2 = arith.minsi %1, %c0_i32 : i32
    %c0_i32_0 = arith.constant 0 : i32
    %c0_i32_1 = arith.constant 0 : i32
    return %2, %c0_i32_0 : i32, i32
  }
  func.func @transform_1(%arg0: i32, %arg1: i32) -> (i32, i32) {
    %c1_i32 = arith.constant 1 : i32
    %0 = arith.muli %arg0, %c1_i32 : i32
    %1 = arith.addi %0, %arg1 : i32
    %c0_i32 = arith.constant 0 : i32
    %2 = arith.minsi %1, %c0_i32 : i32
    %c0_i32_0 = arith.constant 0 : i32
    %c0_i32_1 = arith.constant 0 : i32
    return %2, %c0_i32_0 : i32, i32
  }
  func.func @transform_2(%arg0: i32, %arg1: i32) -> (i32, i32, i32) {
    %c0_i32 = arith.constant 0 : i32
    %c0_i32_0 = arith.constant 0 : i32
    %c0_i32_1 = arith.constant 0 : i32
    return %arg0, %c0_i32, %c0_i32_0 : i32, i32, i32
  }
  func.func @transform_3(%arg0: i32, %arg1: i32) -> (i32, i32, i32) {
    %c0_i32 = arith.constant 0 : i32
    %c0_i32_0 = arith.constant 0 : i32
    %c0_i32_1 = arith.constant 0 : i32
    return %arg0, %c0_i32, %c0_i32_0 : i32, i32, i32
  }
}

</mosaic_0001>

<llo_original>
// kernel: tpu_custom_call.1
$region0: #{tpu_custom_call.1}
  #allocation0 [shape = 'u32[]', space=smem, size = 0x4, offset = 0x4, fixed_abs, tag = 'smem constant byte address 0x4 - core index']
  #allocation1 [shape = 'u32[144,128]{1,0:T(1,128)}', space=vmem, size = 0x12000, scoped, tag = 'internal scratch']
  #allocation2 [shape = 'f32[1,1]{1,0:T(1,128)}', space=vmem, size = 0x200, scoped, tag = 'scratch operand']
  #allocation3 [shape = 'f32[1,1]{1,0:T(1,128)}', space=vmem, size = 0x200, scoped, tag = 'scratch operand']
  %s0 = inlined_call_operand.hbm [shape: f32[8,16], index: 0, kind: input, shape index: {}]
  %s1 = inlined_call_operand.hbm [shape: f32[8,16], index: 1, kind: input, shape index: {}]
  %s2 = inlined_call_operand.hbm [shape: f32[1,1,1], index: 2, kind: output, shape index: {0}]
  %s3 = inlined_call_operand.hbm [shape: f32[1,1,1], index: 3, kind: output, shape index: {1}]
  %4 = xla_tuple %s2, %s3
  %s5 = sld [smem:[#allocation0]]
  $region42: #{tpu_custom_call.1} parent=0
    _
  %s7 = ssub.s32 1, %s5
  %s8 = scalar_select 0, %s7, %s5
  $region1: #{tpu_custom_call.1} parent=0
    #allocation4 [shape = 'u8[4096]{0}', space=vmem, size = 0x1000, scoped, tag = 'input window, operand 0, single buffered']
    #allocation5 [shape = 's32[1]{0}', space=sflag, size = 0x4, scoped, tag = 'scoped memory for tpu_custom_call.1']
    #allocation6 [shape = 's32[1]{0}', space=sflag, size = 0x4, scoped, tag = 'scoped memory for tpu_custom_call.1']
    #allocation7 [shape = 'u8[4096]{0}', space=vmem, size = 0x1000, scoped, tag = 'input window, operand 1, single buffered']
    #allocation8 [shape = 's32[1]{0}', space=sflag, size = 0x4, scoped, tag = 'scoped memory for tpu_custom_call.1']
    #allocation9 [shape = 'u8[512]{0}', space=vmem, size = 0x400, scoped, tag = 'output window, operand 0, single buffered']
    #allocation10 [shape = 'u8[512]{0}', space=vmem, size = 0x400, scoped, tag = 'output window, operand 1, single buffered']
    #allocation11 [shape = 's32[1]{0}', space=sflag, size = 0x4, scoped, tag = 'scoped memory for tpu_custom_call.1']
    %9 = vsyncpa [#allocation5], 0
    %10 = vsyncpa [#allocation8], 0
    %11 = vsyncpa [#allocation6], 0
    %12 = vsyncpa [#allocation11], 0
    // Predicated region
    $region2: #{tpu_custom_call.1} parent=1 // pred_check
      _
    $region3: #{tpu_custom_call.1} parent=1 // pred_check_branch
      %14 = sbr.rel (0) target = $region5
    $region4: #{tpu_custom_call.1} parent=1 // pred_region
      %s15 = sadd.s32 0, 0
      %p16 = scmp.lt.s32.totalorder %s15, 0
      %s17 = scalar_select %p16, %s15, 0
      %s19 = ssub.s32 128, 128
      %20 = vsyncadd [#allocation5], %s19
      %s21 = smul.addr %s17, 128
      %s22 = scalar_lea.hbm %s0, %s21
      %s24 = sshll.u32 [#allocation4], 4
      %s25 = int_to_ptr.vmem [resolvable:$true] %s24
      %27 = dma.hbm_to_vmem [thread:$0]  %s22, 128, %s25, [#allocation5]
    $region5: #{tpu_custom_call.1} parent=1 // pred_fallthru
      _
    // Predicated region
    $region6: #{tpu_custom_call.1} parent=1 // pred_check
      _
    $region7: #{tpu_custom_call.1} parent=1 // pred_check_branch
      %29 = sbr.rel (0) target = $region9
    $region8: #{tpu_custom_call.1} parent=1 // pred_region
      %s30 = sadd.s32 0, 0
      %p31 = scmp.lt.s32.totalorder %s30, 0
      %s32 = scalar_select %p31, %s30, 0
      %s34 = ssub.s32 128, 128
      %35 = vsyncadd [#allocation8], %s34
      %s36 = smul.addr %s32, 128
      %s37 = scalar_lea.hbm %s1, %s36
      %s39 = sshll.u32 [#allocation7], 4
      %s40 = int_to_ptr.vmem [resolvable:$true] %s39
      %42 = dma.hbm_to_vmem [thread:$0]  %s37, 128, %s40, [#allocation8]
    $region9: #{tpu_custom_call.1} parent=1 // pred_fallthru
      _
    // Predicated region
    $region10: #{tpu_custom_call.1} parent=1 // pred_check
      _
    $region11: #{tpu_custom_call.1} parent=1 // pred_check_branch
      %44 = sbr.rel (0) target = $region13
    $region12: #{tpu_custom_call.1} parent=1 // pred_region
      %45 = dma.done [#allocation5], 128
    $region13: #{tpu_custom_call.1} parent=1 // pred_fallthru
      _
    // Predicated region
    $region14: #{tpu_custom_call.1} parent=1 // pred_check
      _
    $region15: #{tpu_custom_call.1} parent=1 // pred_check_branch
      %47 = sbr.rel (0) target = $region17
    $region16: #{tpu_custom_call.1} parent=1 // pred_region
      %48 = dma.done [#allocation8], 128
    $region17: #{tpu_custom_call.1} parent=1 // pred_fallthru
      _
    %s49 = sadd.s32 0, 0
    %p50 = scmp.lt.s32.totalorder %s49, 0
    %s51 = scalar_select %p50, %s49, 0
    %s52 = sadd.s32 0, 0
    %p53 = scmp.lt.s32.totalorder %s52, 0
    %s54 = scalar_select %p53, %s52, 0
    %p55 = scmp.eq.s32.totalorder 0, 0
    // Predicated region
    $region18: #{tpu_custom_call.1} parent=1 // pred_check
      %p56 = pneg %p55
    $region19: #{tpu_custom_call.1} parent=1 // pred_check_branch
      %58 = sbr.rel (%p56) target = $region21
    $region20: #{tpu_custom_call.1} parent=1 // pred_region
      %vm59 = vcmask 0
      %60 = vst.msk [vmem:[#allocation2] sm:$0x1] %vm59, 0.0
      %61 = vst.msk [vmem:[#allocation3] sm:$0x1] %vm59, 0.0
    $region21: #{tpu_custom_call.1} parent=1 // pred_fallthru
      _
    %v62 = vld [vmem:[#allocation4] sm:$0xff]
    %v63 = vld [vmem:[#allocation7] sm:$0xff]
    %v64 = vmul.f32 %v62, %v62
    %vm65 = vcmask 130048
    %v66 = vsel %vm65, %v64, 0.0
    %67 = vadd.xlane.f32.xlu0 %v66
    %v68 = vpop.xlane.xlu0 %67
    %v69 = vrcp.pop 16.0
    %v70 = vmul.f32 %v68, %v69
    %v71 = vrsqrt.pop %v70
    %v72 = vmul.f32 %v70, %v71
    %vm73 = vcmp.eq.f32.partialorder %v70, inf
    %v74 = vsel %vm73, %v70, %v72
    %vm75 = vcmp.eq.f32.partialorder %v70, 0.0
    %v76 = vand.u32 %v70, 2147483648
    %v77 = vsel %vm75, %v76, %v74
    %v78 = vmul.f32 %v63, %v63
    %v79 = vsel %vm65, %v78, 0.0
    %80 = vadd.xlane.f32.xlu0 %v79
    %v81 = vpop.xlane.xlu0 %80
    %v82 = vmul.f32 %v81, %v69
    %v83 = vrsqrt.pop %v82
    %v84 = vmul.f32 %v82, %v83
    %vm85 = vcmp.eq.f32.partialorder %v82, inf
    %v86 = vsel %vm85, %v82, %v84
    %vm87 = vcmp.eq.f32.partialorder %v82, 0.0
    %v88 = vand.u32 %v82, 2147483648
    %v89 = vsel %vm87, %v88, %v86
    %v90 = vsub.f32 %v89, %v77
    %v91 = vand.u32 2147483647, %v90
    %v92 = vmax.f32 %v91, 0.01
    %v93 = vmul.f32 %v92, 100.0
    %v94 = vrsqrt.pop %v93
    %v95 = vmul.f32 %v93, %v94
    %vm96 = vcmp.eq.f32.partialorder %v93, inf
    %v97 = vsel %vm96, %v93, %v95
    %vm98 = vcmp.eq.f32.partialorder %v93, 0.0
    %v99 = vand.u32 %v93, 2147483648
    %v100 = vsel %vm98, %v99, %v97
    %v101 = vmul.f32 %v93, %v100
    %v102 = vmul.f32 %v90, %v90
    %v103 = vld [vmem:[#allocation2] sm:$0x1]
    %vm104 = vcmask 7168
    %v105 = vsel %vm104, %v101, 0.0
    %106 = vadd.xlane.f32.xlu0 %v105
    %v107 = vpop.xlane.xlu0 %106
    %v108 = vrot.slane %v107, 4
    %v109 = vadd.f32 %v107, %v108
    %v110 = vrot.slane %v109, 2
    %v111 = vadd.f32 %v109, %v110
    %v112 = vrot.slane %v111, 1
    %v113 = vadd.f32 %v111, %v112
    %s114 = vtos %v113
    %v115 = vstv %s114
    %v116 = vadd.f32 %v103, %v115
    %vm117 = vcmask 0
    %118 = vst.msk [vmem:[#allocation2] sm:$0x1] %vm117, %v116
    %v119 = vld [vmem:[#allocation3] sm:$0x1]
    %v120 = vsel %vm104, %v102, 0.0
    %121 = vadd.xlane.f32.xlu0 %v120
    %v122 = vpop.xlane.xlu0 %121
    %v123 = vrot.slane %v122, 4
    %v124 = vadd.f32 %v122, %v123
    %v125 = vrot.slane %v124, 2
    %v126 = vadd.f32 %v124, %v125
    %v127 = vrot.slane %v126, 1
    %v128 = vadd.f32 %v126, %v127
    %s129 = vtos %v128
    %v130 = vstv %s129
    %v131 = vadd.f32 %v119, %v130
    %132 = vst.msk [vmem:[#allocation3] sm:$0x1] %vm117, %v131
    // Predicated region
    $region22: #{tpu_custom_call.1} parent=1 // pred_check
      %p133 = pneg %p55
    $region23: #{tpu_custom_call.1} parent=1 // pred_check_branch
      %135 = sbr.rel (%p133) target = $region25
    $region24: #{tpu_custom_call.1} parent=1 // pred_region
      %v136 = vld [vmem:[#allocation2] sm:$0x1]
      %137 = vst.msk [vmem:[#allocation9] sm:$0x1] %vm117, %v136
      %v138 = vld [vmem:[#allocation3] sm:$0x1]
      %139 = vst.msk [vmem:[#allocation10] sm:$0x1] %vm117, %v138
    $region25: #{tpu_custom_call.1} parent=1 // pred_fallthru
      _
    // Predicated region
    $region26: #{tpu_custom_call.1} parent=1 // pred_check
      _
    $region27: #{tpu_custom_call.1} parent=1 // pred_check_branch
      %141 = sbr.rel (0) target = $region29
    $region28: #{tpu_custom_call.1} parent=1 // pred_region
      %s143 = ssub.s32 16, 16
      %144 = vsyncadd [#allocation6], %s143
      %s146 = sshll.u32 [#allocation9], 4
      %s147 = int_to_ptr.vmem [resolvable:$true] %s146
      %149 = dma.vmem_to_hbm [thread:$0]  %s147, 16, %s2, [#allocation6]
    $region29: #{tpu_custom_call.1} parent=1 // pred_fallthru
      _
    // Predicated region
    $region30: #{tpu_custom_call.1} parent=1 // pred_check
      _
    $region31: #{tpu_custom_call.1} parent=1 // pred_check_branch
      %151 = sbr.rel (0) target = $region33
    $region32: #{tpu_custom_call.1} parent=1 // pred_region
      %s153 = ssub.s32 16, 16
      %154 = vsyncadd [#allocation11], %s153
      %s156 = sshll.u32 [#allocation10], 4
      %s157 = int_to_ptr.vmem [resolvable:$true] %s156
      %159 = dma.vmem_to_hbm [thread:$0]  %s157, 16, %s3, [#allocation11]
    $region33: #{tpu_custom_call.1} parent=1 // pred_fallthru
      _
    // Predicated region
    $region34: #{tpu_custom_call.1} parent=1 // pred_check
      _
    $region35: #{tpu_custom_call.1} parent=1 // pred_check_branch
      %161 = sbr.rel (0) target = $region37
    $region36: #{tpu_custom_call.1} parent=1 // pred_region
      %162 = dma.done [#allocation6], 16
    $region37: #{tpu_custom_call.1} parent=1 // pred_fallthru
      _
    // Predicated region
    $region38: #{tpu_custom_call.1} parent=1 // pred_check
      _
    $region39: #{tpu_custom_call.1} parent=1 // pred_check_branch
      %164 = sbr.rel (0) target = $region41
    $region40: #{tpu_custom_call.1} parent=1 // pred_region
      %165 = dma.done [#allocation11], 16
    $region41: #{tpu_custom_call.1} parent=1 // pred_fallthru
      _
    %166 = vsyncpa [#allocation5], 1
    %167 = vsyncpa [#allocation8], 1
    %168 = vsyncpa [#allocation6], 1
    %169 = vsyncpa [#allocation11], 1

</llo_original>
